<compile_context>
chip_gen: v7x
topology: tpu7x:2x2x1
jax: 0.10.0
libtpu: 0.0.40
codegen_flags: <defaults>
</compile_context>

<pallas_src>
from functools import partial

import jax
import jax.numpy as jnp
from jax import lax
from jax.experimental import pallas as pl
from jax.experimental.pallas import tpu as pltpu


def _round_up(a, m):
    return (a + m - 1) // m * m


def _pick_spatial_tile(s, tile_s, min_tiles=1):
    """Spatial tile TS: multiple of 128 (prefer 256) or == S; prefer divisors of S so no
    ragged edge block exists; cap so the grid has at least `min_tiles` spatial steps."""
    limit = max(int(tile_s), 128)
    if min_tiles > 1:
        limit = min(limit, max(128, _round_up(-(-s // min_tiles), 128)))
    if s <= limit:
        return s                                  # one full-extent tile (always legal)
    # Largest aligned divisor of S that fits (256-granularity first, then 128).
    for gran in (256, 128):
        t = (limit // gran) * gran
        while t >= gran:
            if s % t == 0:
                return t
            t -= gran
    # No aligned divisor: largest 256-aligned tile (fallback 128); the last grid step is a
    # partial edge block whose out-of-range writeback Pallas masks.
    t = (limit // 256) * 256
    return t if t >= 256 else 128


def _vq_fused_kernel(x_ref, cb_ref, cbT_ref, e2h_ref, q_ref, loss_ref, *, s_total, tile_s):
    # x_ref:    (C, TS)        slab of the NCDHW tensor (channels on sublanes, spatial on lanes)
    # cb_ref:   (K_pad, C)     codebook, bf16 (resident; argmin scores only)
    # cbT_ref:  (C, K_pad)     codebook^T, f32 (resident; exact one-hot gather)
    # e2h_ref:  (K_pad, 1)     0.5*||e||^2, f32 (padded rows hold 1e30 so they never win)
    # q_ref:    (C, TS)        quantized output slab (lane-dense, already NCDHW layout)
    # loss_ref: (1, 1, 8, 128) per-tile partial sum of squared error (value broadcast)
    xv_in = x_ref[...]
    xv = xv_in.astype(jnp.float32)                 # (C, TS)
    kp = cb_ref.shape[0]
    ts = xv.shape[1]

    # Argmin distance: 0.5*||e||^2 - <x, e>  (||x||^2 and the global factor 2 dropped;
    # argmin is invariant).  bf16 scores on the MXU, f32 accumulation.
    scores = jnp.dot(cb_ref[...], xv_in.astype(jnp.bfloat16),
                     preferred_element_type=jnp.float32)        # (K_pad, TS)
    dist = e2h_ref[...] - scores                                # (K_pad, TS)

    # Argmin over codes (axis 0) with first-index tie-break, staying 2-D.
    # TODO(synk): K-tile this section for K_pad >= ~1024 to bound the (K_pad, TS) temporaries.
    dmin = jnp.min(dist, axis=0, keepdims=True)                 # (1, TS)
    iota_k = lax.broadcasted_iota(jnp.int32, (kp, ts), 0)
    idx = jnp.min(jnp.where(dist == dmin, iota_k, kp), axis=0, keepdims=True)   # (1, TS)
    onehot = (iota_k == idx).astype(jnp.float32)                # (K_pad, TS)

    # Exact gather of codebook rows via one-hot matmul (f32) -> (C, TS), NCDHW layout.
    q = jnp.dot(cbT_ref[...], onehot, preferred_element_type=jnp.float32)
    q_ref[...] = q.astype(q_ref.dtype)

    # Commitment-loss partial: sum((quantize - x)^2) over valid spatial columns.
    diff = q - xv
    csum = jnp.sum(diff * diff, axis=0, keepdims=True)          # (1, TS): reduce C first,
    if s_total % tile_s != 0:                                   # then mask only a (1, TS) row.
        col = pl.program_id(1) * tile_s + lax.broadcasted_iota(jnp.int32, (1, ts), 1)
        csum = jnp.where(col < s_total, csum, 0.0)
    loss_ref[...] = jnp.full(loss_ref.shape, jnp.sum(csum), dtype=loss_ref.dtype)


def permute_to_from_forward(x, codebook, *, commitment=1.0, tile_s=512):
    """PermuteToFrom(VectorQuantize).forward
    x: (B, C, D, H, W), codebook: (K, C) -> (out (B, C, D, H, W), loss scalar)."""
    b, c, d, h, w = x.shape
    s = d * h * w
    k = codebook.shape[0]

    min_tiles = 2 if b == 1 else 1          # keep >= 2 parallel grid steps for v7x megacore
    ts = _pick_spatial_tile(s, tile_s, min_tiles)
    n_s = -(-s // ts)

    x3 = x.reshape(b, c, s)                 # zero-copy: D,H,W are contiguous in NCDHW
    # No jnp.pad / output slice: ragged S handled by a partial edge block (masked writeback).

    # Codebook prep (tiny, once, hoisted out of the grid loop).
    k_pad = _round_up(k, 256) if k > 128 else _round_up(k, 128)
    cb32 = codebook.astype(jnp.float32)
    e2h = 0.5 * jnp.sum(cb32 * cb32, axis=-1, keepdims=True)     # 0.5*||e||^2 (factor 2 folded)
    if k_pad != k:
        cb32 = jnp.pad(cb32, ((0, k_pad - k), (0, 0)))
        e2h = jnp.pad(e2h, ((0, k_pad - k), (0, 0)), constant_values=1e30)
    cb_bf16 = cb32.astype(jnp.bfloat16)      # argmin-scores operand (half the VMEM/DMA)
    cbT = cb32.T                             # exact-gather operand
    # TODO(synk): on v7x with huge codebooks, single-buffer cb/cbT/e2h (pl.Buffered(1)) or
    # drop cbT via a transposed-lhs dot_general once the MLIR shows no hidden transpose.

    kernel = partial(_vq_fused_kernel, s_total=s, tile_s=ts)

    q3, loss_part = pl.pallas_call(
        kernel,
        out_shape=(
            jax.ShapeDtypeStruct((b, c, s), x.dtype),
            jax.ShapeDtypeStruct((b, n_s, 8, 128), jnp.float32),
        ),
        grid_spec=pltpu.PrefetchScalarGridSpec(
            num_scalar_prefetch=0,
            grid=(b, n_s),
            in_specs=[
                pl.BlockSpec((None, c, ts), lambda bi, si: (bi, 0, si)),    # x slab
                pl.BlockSpec((k_pad, c), lambda bi, si: (0, 0)),            # codebook (bf16)
                pl.BlockSpec((c, k_pad), lambda bi, si: (0, 0)),            # codebook^T (f32)
                pl.BlockSpec((k_pad, 1), lambda bi, si: (0, 0)),            # 0.5*||e||^2
            ],
            out_specs=[
                pl.BlockSpec((None, c, ts), lambda bi, si: (bi, 0, si)),    # quantized slab
                pl.BlockSpec((1, 1, 8, 128), lambda bi, si: (bi, si, 0, 0)),  # loss partials
            ],
        ),
        compiler_params=pltpu.CompilerParams(
            # No resident accumulator -> every axis independent -> megacore can shard both.
            dimension_semantics=("parallel", "parallel"),
            vmem_limit_bytes=48 * 1024 * 1024,
        ),
    )(x3, cb_bf16, cbT, e2h)

    # F.mse_loss(quantize, input, reduction='mean') * commitment over B*S*C valid elements.
    sq_sum = jnp.sum(loss_part[:, :, 0, 0])
    loss = (sq_sum / jnp.float32(b * s * c)) * commitment

    out = q3.reshape(b, c, d, h, w)          # already NCDHW; no transpose round trip
    return out, loss


# ---------------------------------------------------------------------------------------------
# Pure-JAX reference and a tie-tolerant checker (bf16 argmin may flip near-tied codes; the
# emitted values are still exact codebook rows and must be within bf16 tolerance of optimal).
# ---------------------------------------------------------------------------------------------
def _reference(x, codebook):
    b, ch, d, h, w = x.shape
    xf = jnp.transpose(x, (0, 2, 3, 4, 1)).reshape(-1, ch).astype(jnp.float32)
    cb = codebook.astype(jnp.float32)
    dist = (jnp.sum(xf * xf, -1, keepdims=True)
            - 2.0 * jnp.dot(xf, cb.T, precision=lax.Precision.HIGHEST)
            + jnp.sum(cb * cb, -1)[None, :])
    idx = jnp.argmin(dist, axis=-1)
    q = cb[idx]
    loss = jnp.mean((q - xf) ** 2)
    out = jnp.transpose(q.reshape(b, d, h, w, ch), (0, 4, 1, 2, 3))
    return out.astype(x.dtype), loss


def _check_case(x, codebook, out, loss, commitment=1.0):
    b, ch, d, h, w = x.shape
    assert out.shape == x.shape
    xf = jnp.transpose(x, (0, 2, 3, 4, 1)).reshape(-1, ch).astype(jnp.float32)
    of = jnp.transpose(out, (0, 2, 3, 4, 1)).reshape(-1, ch).astype(jnp.float32)
    cb = codebook.astype(jnp.float32)

    # (a) every output vector is (exactly) a codebook row — the gather matmul runs in f32.
    d_out_cb = jnp.sum((of[:, None, :] - cb[None, :, :]) ** 2, axis=-1)       # (N, K)
    assert float(jnp.max(jnp.min(d_out_cb, axis=-1))) < 1e-4

    # (b) the selected code is within bf16-argmin tolerance of the true nearest code.
    d_chosen = jnp.sum((of - xf) ** 2, axis=-1)                                # (N,)
    d_min = jnp.min(jnp.sum((xf[:, None, :] - cb[None, :, :]) ** 2, axis=-1), axis=-1)
    gap_tol = 2e-2 * (jnp.sum(xf * xf, axis=-1) + jnp.max(jnp.sum(cb * cb, axis=-1)))
    assert bool(jnp.all(d_chosen <= d_min + gap_tol))
    frac_exact = float(jnp.mean((d_chosen <= d_min + 1e-4).astype(jnp.float32)))
    assert frac_exact > 0.9, frac_exact

    # (c) loss matches mse(out, x)*commitment computed from the kernel's own output (tight)
    #     and the exact-argmin reference (loose, near-tie flips only).
    loss_self = jnp.mean((of - xf) ** 2) * commitment
    assert jnp.allclose(loss, loss_self, rtol=1e-4, atol=1e-6), (float(loss), float(loss_self))
    _, ref_loss = _reference(x, codebook)
    assert jnp.allclose(loss, ref_loss * commitment, rtol=5e-3, atol=1e-4)


if __name__ == "__main__":
    key = jax.random.PRNGKey(0)
    k1, k2, k3, k4, k5, k6 = jax.random.split(key, 6)

    # Case 1: aligned spatial size (S = 4*8*8 = 256), K = 64 -> one 256-wide tile per batch.
    B, C, D, H, W, K = 2, 32, 4, 8, 8, 64
    x = jax.random.normal(k1, (B, C, D, H, W), dtype=jnp.float32)
    cb = jax.random.normal(k2, (K, C), dtype=jnp.float32) * 0.5
    out, loss = permute_to_from_forward(x, cb)
    jax.block_until_ready((out, loss))
    _check_case(x, cb, out, loss)

    # Case 2: ragged spatial size (S = 4*10*8 = 320) with tile_s=128 -> 3 spatial tiles, the
    # last one a partial edge block (no wrapper pad/slice); K not 128-aligned.
    B, C, D, H, W, K = 2, 32, 4, 10, 8, 48
    x = jax.random.normal(k3, (B, C, D, H, W), dtype=jnp.float32)
    cb = jax.random.normal(k4, (K, C), dtype=jnp.float32) * 0.5
    out, loss = permute_to_from_forward(x, cb, tile_s=128)
    jax.block_until_ready((out, loss))
    _check_case(x, cb, out, loss)

    # Case 3: batch of 1 -> spatial axis split so the parallel grid extent stays >= 2 (v7x);
    # K > 128 -> codebook padded to a multiple of 256.
    B, C, D, H, W, K = 1, 16, 8, 8, 8, 200
    x = jax.random.normal(k5, (B, C, D, H, W), dtype=jnp.float32)
    cb = jax.random.normal(k6, (K, C), dtype=jnp.float32) * 0.5
    out, loss = permute_to_from_forward(x, cb)
    jax.block_until_ready((out, loss))
    _check_case(x, cb, out, loss)

    print("KERNEL_OK")
</pallas_src>

<mosaic_0001>
module attributes {stable_mosaic.version = 11 : i64} {
  func.func @_vq_fused_kernel(%arg0: i32, %arg1: i32, %arg2: memref<1x32x256xf32, #tpu.memory_space<vmem>>, %arg3: memref<128x32xbf16, #tpu.memory_space<vmem>>, %arg4: memref<32x128xf32, #tpu.memory_space<vmem>>, %arg5: memref<128x1xf32, #tpu.memory_space<vmem>>, %arg6: memref<1x32x256xf32, #tpu.memory_space<vmem>>, %arg7: memref<1x1x8x128xf32, #tpu.memory_space<vmem>>) attributes {dimension_semantics = [#tpu.dimension_semantics<parallel>, #tpu.dimension_semantics<parallel>], iteration_bounds = array<i64: 2, 1>, scalar_prefetch = 0 : i64, scratch_operands = 0 : i64, tpu.core_type = #tpu.core_type<tc>, window_params = [{transform_indices = @transform_0, window_bounds = array<i64: 1, 32, 256>}, {pipeline_mode = #tpu.pipeline_mode<synchronous>, transform_indices = @transform_1, window_bounds = array<i64: 128, 32>}, {pipeline_mode = #tpu.pipeline_mode<synchronous>, transform_indices = @transform_2, window_bounds = array<i64: 32, 128>}, {pipeline_mode = #tpu.pipeline_mode<synchronous>, transform_indices = @transform_3, window_bounds = array<i64: 128, 1>}, {transform_indices = @transform_4, window_bounds = array<i64: 1, 32, 256>}, {transform_indices = @transform_5, window_bounds = array<i64: 1, 1, 8, 128>}]} {
    %c0 = arith.constant 0 : index
    %c0_0 = arith.constant 0 : index
    %c0_1 = arith.constant 0 : index
    %0 = vector.load %arg2[%c0, %c0_0, %c0_1] : memref<1x32x256xf32, #tpu.memory_space<vmem>>, vector<1x32x256xf32>
    %1 = vector.shape_cast %0 : vector<1x32x256xf32> to vector<32x256xf32>
    %c0_2 = arith.constant 0 : index
    %c0_3 = arith.constant 0 : index
    %2 = vector.load %arg3[%c0_2, %c0_3] : memref<128x32xbf16, #tpu.memory_space<vmem>>, vector<128x32xbf16>
    %3 = arith.truncf %1 : vector<32x256xf32> to vector<32x256xbf16>
    %cst = arith.constant dense<0.000000e+00> : vector<128x256xf32>
    %4 = tpu.matmul %2, %3, %cst {dimension_numbers = #tpu.dot_dimension_numbers<[1], [0], [0], [1], [0, 0, 1, 1], [], []>} : vector<128x32xbf16>, vector<32x256xbf16>, vector<128x256xf32> -> vector<128x256xf32>
    %c0_4 = arith.constant 0 : index
    %c0_5 = arith.constant 0 : index
    %5 = vector.load %arg5[%c0_4, %c0_5] : memref<128x1xf32, #tpu.memory_space<vmem>>, vector<128x1xf32>
    %6 = vector.broadcast %5 : vector<128x1xf32> to vector<128x256xf32>
    %7 = arith.subf %6, %4 : vector<128x256xf32>
    %cst_6 = arith.constant dense<0x7F800000> : vector<256xf32>
    %8 = vector.multi_reduction <minimumf>, %7, %cst_6 [0] : vector<128x256xf32> to vector<256xf32>
    %9 = vector.shape_cast %8 : vector<256xf32> to vector<1x256xf32>
    %10 = tpu.iota {dimensions = array<i32: 0>} : vector<128x256xi32>
    %11 = vector.broadcast %9 : vector<1x256xf32> to vector<128x256xf32>
    %12 = arith.cmpf oeq, %7, %11 : vector<128x256xf32>
    %c128_i32 = arith.constant 128 : i32
    %13 = vector.broadcast %c128_i32 : i32 to vector<128x256xi32>
    %14 = arith.select %12, %10, %13 : vector<128x256xi1>, vector<128x256xi32>
    %cst_7 = arith.constant dense<2147483647> : vector<256xi32>
    %15 = vector.multi_reduction <minsi>, %14, %cst_7 [0] : vector<128x256xi32> to vector<256xi32>
    %16 = vector.shape_cast %15 : vector<256xi32> to vector<1x256xi32>
    %17 = vector.broadcast %16 : vector<1x256xi32> to vector<128x256xi32>
    %18 = arith.cmpi eq, %10, %17 : vector<128x256xi32>
    %19 = arith.extui %18 : vector<128x256xi1> to vector<128x256xi32>
    %20 = arith.sitofp %19 : vector<128x256xi32> to vector<128x256xf32>
    %c0_8 = arith.constant 0 : index
    %c0_9 = arith.constant 0 : index
    %21 = vector.load %arg4[%c0_8, %c0_9] : memref<32x128xf32, #tpu.memory_space<vmem>>, vector<32x128xf32>
    %cst_10 = arith.constant dense<0.000000e+00> : vector<32x256xf32>
    %22 = tpu.matmul %21, %20, %cst_10 {dimension_numbers = #tpu.dot_dimension_numbers<[1], [0], [0], [1], [0, 0, 1, 1], [], []>} : vector<32x128xf32>, vector<128x256xf32>, vector<32x256xf32> -> vector<32x256xf32>
    %c0_11 = arith.constant 0 : index
    %c0_12 = arith.constant 0 : index
    %c0_13 = arith.constant 0 : index
    %23 = vector.load %arg6[%c0_11, %c0_12, %c0_13] : memref<1x32x256xf32, #tpu.memory_space<vmem>>, vector<1x32x256xf32>
    %24 = vector.shape_cast %23 : vector<1x32x256xf32> to vector<32x256xf32>
    %25 = vector.shape_cast %22 : vector<32x256xf32> to vector<1x32x256xf32>
    tpu.vector_store %arg6[%c0_11, %c0_12, %c0_13], %25 {strides = array<i32>} : memref<1x32x256xf32, #tpu.memory_space<vmem>>, vector<1x32x256xf32>,
    %26 = arith.subf %22, %1 : vector<32x256xf32>
    %27 = arith.mulf %26, %26 : vector<32x256xf32>
    %cst_14 = arith.constant dense<0.000000e+00> : vector<256xf32>
    %28 = vector.multi_reduction <add>, %27, %cst_14 [0] : vector<32x256xf32> to vector<256xf32>
    %29 = vector.shape_cast %28 : vector<256xf32> to vector<1x256xf32>
    %30 = vector.shape_cast %29 : vector<1x256xf32> to vector<1x1x256xf32>
    %cst_15 = arith.constant dense<0.000000e+00> : vector<1xf32>
    %31 = vector.multi_reduction <add>, %30, %cst_15 [1, 2] : vector<1x1x256xf32> to vector<1xf32>
    %32 = vector.shape_cast %31 : vector<1xf32> to vector<1x1x1xf32>
    %33 = vector.extract %32[0, 0, 0] : f32 from vector<1x1x1xf32>
    %34 = vector.broadcast %33 : f32 to vector<1x1x8x128xf32>
    %c0_16 = arith.constant 0 : index
    %c0_17 = arith.constant 0 : index
    %c0_18 = arith.constant 0 : index
    %c0_19 = arith.constant 0 : index
    %35 = vector.load %arg7[%c0_16, %c0_17, %c0_18, %c0_19] : memref<1x1x8x128xf32, #tpu.memory_space<vmem>>, vector<1x1x8x128xf32>
    tpu.vector_store %arg7[%c0_16, %c0_17, %c0_18, %c0_19], %34 {strides = array<i32>} : memref<1x1x8x128xf32, #tpu.memory_space<vmem>>, vector<1x1x8x128xf32>,
    return
  }
  func.func @transform_0(%arg0: i32, %arg1: i32) -> (i32, i32, i32) {
    %c0_i32 = arith.constant 0 : i32
    %c0_i32_0 = arith.constant 0 : i32
    return %arg0, %c0_i32, %arg1 : i32, i32, i32
  }
  func.func @transform_1(%arg0: i32, %arg1: i32) -> (i32, i32) {
    %c0_i32 = arith.constant 0 : i32
    %c0_i32_0 = arith.constant 0 : i32
    %c0_i32_1 = arith.constant 0 : i32
    return %c0_i32, %c0_i32_0 : i32, i32
  }
  func.func @transform_2(%arg0: i32, %arg1: i32) -> (i32, i32) {
    %c0_i32 = arith.constant 0 : i32
    %c0_i32_0 = arith.constant 0 : i32
    %c0_i32_1 = arith.constant 0 : i32
    return %c0_i32, %c0_i32_0 : i32, i32
  }
  func.func @transform_3(%arg0: i32, %arg1: i32) -> (i32, i32) {
    %c0_i32 = arith.constant 0 : i32
    %c0_i32_0 = arith.constant 0 : i32
    %c0_i32_1 = arith.constant 0 : i32
    return %c0_i32, %c0_i32_0 : i32, i32
  }
  func.func @transform_4(%arg0: i32, %arg1: i32) -> (i32, i32, i32) {
    %c0_i32 = arith.constant 0 : i32
    %c0_i32_0 = arith.constant 0 : i32
    return %arg0, %c0_i32, %arg1 : i32, i32, i32
  }
  func.func @transform_5(%arg0: i32, %arg1: i32) -> (i32, i32, i32, i32) {
    %c0_i32 = arith.constant 0 : i32
    %c0_i32_0 = arith.constant 0 : i32
    %c0_i32_1 = arith.constant 0 : i32
    return %arg0, %arg1, %c0_i32, %c0_i32_0 : i32, i32, i32, i32
  }
}

</mosaic_0001>

<llo_original>
// kernel: tpu_custom_call.1
$region0: #{tpu_custom_call.1}
  #allocation0 [shape = 'u32[]', space=smem, size = 0x4, offset = 0x4, fixed_abs, tag = 'smem constant byte address 0x4 - core index']
  #allocation1 [shape = 'u32[144,128]{1,0:T(1,128)}', space=vmem, size = 0x12000, scoped, tag = 'internal scratch']
  %s0 = inlined_call_operand.vmem [shape: f32[2,32,256], index: 0, kind: input, shape index: {}]
  %s1 = inlined_call_operand.vmem [shape: bf16[128,32], index: 1, kind: input, shape index: {}]
  %s2 = inlined_call_operand.vmem [shape: f32[32,128], index: 2, kind: input, shape index: {}]
  %s3 = inlined_call_operand.vmem [shape: f32[128,1], index: 3, kind: input, shape index: {}]
  %s4 = inlined_call_operand.hbm [shape: f32[2,32,256], index: 4, kind: output, shape index: {0}]
  %s5 = inlined_call_operand.hbm [shape: f32[2,1,8,128], index: 5, kind: output, shape index: {1}]
  %6 = xla_tuple %s4, %s5
  %s7 = sld [smem:[#allocation0]]
  $region57: #{tpu_custom_call.1} parent=0
    _
  %s9 = ssub.s32 1, %s7
  %s10 = scalar_select 0, %s9, %s7
  $region1: #{tpu_custom_call.1} parent=0
    #allocation2 [shape = 'u8[65536]{0}', space=vmem, size = 0x10000, scoped, tag = 'output window, operand 0']
    #allocation3 [shape = 's32[2]{0}', space=sflag, size = 0x8, scoped, tag = 'scoped memory for tpu_custom_call.1']
    #allocation4 [shape = 'u8[8192]{0}', space=vmem, size = 0x2000, scoped, tag = 'output window, operand 1']
    #allocation5 [shape = 's32[2]{0}', space=sflag, size = 0x8, scoped, tag = 'scoped memory for tpu_custom_call.1']
    %11 = vsyncpa [#allocation3], 0
    %s12 = scalar_lea.sflag [#allocation3], 1
    %13 = vsyncpa %s12, 0
    %14 = vsyncpa [#allocation5], 0
    %s15 = scalar_lea.sflag [#allocation5], 1
    %16 = vsyncpa %s15, 0
    loop: start=0, step=1, limit=4
    $region2: #{tpu_custom_call.1} parent=1 // loop_pre_header
      _
    $region3: #{tpu_custom_call.1} parent=1 // loop_header
      %s18 = sphi 0, %s22
      %p19 = scmp.ge.s32.totalorder %s18, 4
      %s25 = sphi 0, %s37
      %s26 = sphi 0, %s33
      %s27 = sphi 0, %s25
      %s28 = sphi 0, %s26
      %s29 = sphi 0, %s27
      %s30 = sphi 0, %s28
      %s42 = sphi 0, %s44
      %s45 = sphi 0, %s42
      %s46 = sphi 0, %s45
      %s62 = sphi 0, %s46
      %s66 = sphi 0, %s66
      %s68 = sphi 0, %s66
      %s69 = sphi 0, %s68
      %s83 = sphi 0, %s69
      %s87 = sphi 0, %s87
      %s89 = sphi 0, %s87
      %s90 = sphi 0, %s89
      %s104 = sphi 0, %s90
      %s108 = sphi 0, %s108
      %s110 = sphi 0, %s108
      %s111 = sphi 0, %s110
      %s125 = sphi 0, %s111
      %s133 = sphi 0, %s135
      %s136 = sphi 0, %s133
      %s137 = sphi 0, %s136
      %s153 = sphi 0, %s137
      %s161 = sphi 0, %s163
      %s164 = sphi 0, %s161
      %s165 = sphi 0, %s164
      %s181 = sphi 0, %s165
    $region4: #{tpu_custom_call.1} parent=1 // loop_header_branch
      %21 = sbr.rel (%p19) target = $region8
    $region5: #{tpu_custom_call.1} parent=1 // loop_body
      %s23 = ssub.s32 %s18, 1
      %s24 = ssub.s32 %s18, 2
      %s31 = sadd.s32 1, %s26
      %p32 = scmp.ge.s32.totalorder %s31, 1
      %s33 = scalar_select %p32, 0, %s31
      %s34 = sadd.s32 1, %s25
      %s35 = scalar_select %p32, %s34, %s25
      %p36 = scmp.ge.s32.totalorder %s35, 2
      %s37 = scalar_select %p36, 0, %s35
      %s38 = ssub.s32 %s25, %s37
      %s39 = ssub.s32 %s26, %s33
      %s40 = sor.u32 %s38, %s39
      %p41 = scmp.eq.s32.totalorder %s40, 0
      %s43 = sadd.s32 %s42, 1
      %s44 = scalar_select %p41, %s42, %s43
      %p47 = pneg %p41
      %p48 = scmp.eq.s32.totalorder %s18, 1
      %p49 = por %p47, %p48
      %p50 = scmp.ne.s32.totalorder %s42, %s45
      %p51 = scmp.eq.s32.totalorder %s18, 0
      %p52 = por %p50, %p51
      %p53 = scmp.ne.s32.totalorder %s42, %s45
      %p54 = scmp.eq.s32.totalorder %s23, 1
      %p55 = por %p53, %p54
      %p56 = scmp.ne.s32.totalorder %s45, %s46
      %p57 = scmp.eq.s32.totalorder %s23, 0
      %p58 = por %p56, %p57
      %p59 = scmp.ne.s32.totalorder %s45, %s46
      %p60 = scmp.eq.s32.totalorder %s24, 1
      %p61 = por %p59, %p60
      %p63 = scmp.ne.s32.totalorder %s46, %s62
      %p64 = scmp.eq.s32.totalorder %s24, 0
      %p65 = por %p63, %p64
      %s67 = sadd.s32 %s66, 1
      %p70 = scmp.eq.s32.totalorder %s18, 1
      %p71 = scmp.ne.s32.totalorder %s66, %s68
      %p72 = scmp.eq.s32.totalorder %s18, 0
      %p73 = por %p71, %p72
      %p74 = scmp.ne.s32.totalorder %s66, %s68
      %p75 = scmp.eq.s32.totalorder %s23, 1
      %p76 = por %p74, %p75
      %p77 = scmp.ne.s32.totalorder %s68, %s69
      %p78 = scmp.eq.s32.totalorder %s23, 0
      %p79 = por %p77, %p78
      %p80 = scmp.ne.s32.totalorder %s68, %s69
      %p81 = scmp.eq.s32.totalorder %s24, 1
      %p82 = por %p80, %p81
      %p84 = scmp.ne.s32.totalorder %s69, %s83
      %p85 = scmp.eq.s32.totalorder %s24, 0
      %p86 = por %p84, %p85
      %s88 = sadd.s32 %s87, 1
      %p91 = scmp.eq.s32.totalorder %s18, 1
      %p92 = scmp.ne.s32.totalorder %s87, %s89
      %p93 = scmp.eq.s32.totalorder %s18, 0
      %p94 = por %p92, %p93
      %p95 = scmp.ne.s32.totalorder %s87, %s89
      %p96 = scmp.eq.s32.totalorder %s23, 1
      %p97 = por %p95, %p96
      %p98 = scmp.ne.s32.totalorder %s89, %s90
      %p99 = scmp.eq.s32.totalorder %s23, 0
      %p100 = por %p98, %p99
      %p101 = scmp.ne.s32.totalorder %s89, %s90
      %p102 = scmp.eq.s32.totalorder %s24, 1
      %p103 = por %p101, %p102
      %p105 = scmp.ne.s32.totalorder %s90, %s104
      %p106 = scmp.eq.s32.totalorder %s24, 0
      %p107 = por %p105, %p106
      %s109 = sadd.s32 %s108, 1
      %p112 = scmp.eq.s32.totalorder %s18, 1
      %p113 = scmp.ne.s32.totalorder %s108, %s110
      %p114 = scmp.eq.s32.totalorder %s18, 0
      %p115 = por %p113, %p114
      %p116 = scmp.ne.s32.totalorder %s108, %s110
      %p117 = scmp.eq.s32.totalorder %s23, 1
      %p118 = por %p116, %p117
      %p119 = scmp.ne.s32.totalorder %s110, %s111
      %p120 = scmp.eq.s32.totalorder %s23, 0
      %p121 = por %p119, %p120
      %p122 = scmp.ne.s32.totalorder %s110, %s111
      %p123 = scmp.eq.s32.totalorder %s24, 1
      %p124 = por %p122, %p123
      %p126 = scmp.ne.s32.totalorder %s111, %s125
      %p127 = scmp.eq.s32.totalorder %s24, 0
      %p128 = por %p126, %p127
      %s129 = ssub.s32 %s25, %s37
      %s130 = ssub.s32 %s26, %s33
      %s131 = sor.u32 %s129, %s130
      %p132 = scmp.eq.s32.totalorder %s131, 0
      %s134 = sadd.s32 %s133, 1
      %s135 = scalar_select %p132, %s133, %s134
      %p138 = pneg %p132
      %p139 = scmp.eq.s32.totalorder %s18, 1
      %p140 = por %p138, %p139
      %p141 = scmp.ne.s32.totalorder %s133, %s136
      %p142 = scmp.eq.s32.totalorder %s18, 0
      %p143 = por %p141, %p142
      %p144 = scmp.ne.s32.totalorder %s133, %s136
      %p145 = scmp.eq.s32.totalorder %s23, 1
      %p146 = por %p144, %p145
      %p147 = scmp.ne.s32.totalorder %s136, %s137
      %p148 = scmp.eq.s32.totalorder %s23, 0
      %p149 = por %p147, %p148
      %p150 = scmp.ne.s32.totalorder %s136, %s137
      %p151 = scmp.eq.s32.totalorder %s24, 1
      %p152 = por %p150, %p151
      %p154 = scmp.ne.s32.totalorder %s137, %s153
      %p155 = scmp.eq.s32.totalorder %s24, 0
      %p156 = por %p154, %p155
      %s157 = ssub.s32 %s25, %s37
      %s158 = ssub.s32 %s26, %s33
      %s159 = sor.u32 %s157, %s158
      %p160 = scmp.eq.s32.totalorder %s159, 0
      %s162 = sadd.s32 %s161, 1
      %s163 = scalar_select %p160, %s161, %s162
      %p166 = pneg %p160
      %p167 = scmp.eq.s32.totalorder %s18, 1
      %p168 = por %p166, %p167
      %p169 = scmp.ne.s32.totalorder %s161, %s164
      %p170 = scmp.eq.s32.totalorder %s18, 0
      %p171 = por %p169, %p170
      %p172 = scmp.ne.s32.totalorder %s161, %s164
      %p173 = scmp.eq.s32.totalorder %s23, 1
      %p174 = por %p172, %p173
      %p175 = scmp.ne.s32.totalorder %s164, %s165
      %p176 = scmp.eq.s32.totalorder %s23, 0
      %p177 = por %p175, %p176
      %p178 = scmp.ne.s32.totalorder %s164, %s165
      %p179 = scmp.eq.s32.totalorder %s24, 1
      %p180 = por %p178, %p179
      %p182 = scmp.ne.s32.totalorder %s165, %s181
      %p183 = scmp.eq.s32.totalorder %s24, 0
      %p184 = por %p182, %p183
      %p185 = scmp.le.s32.totalorder 1, %s18
      %p186 = scmp.lt.s32.totalorder %s18, 3
      %p187 = pnand %p185, %p186
      %p188 = pneg %p187
      // Predicated region
      $region9: #{tpu_custom_call.1} parent=5 // pred_check
        _
      $region10: #{tpu_custom_call.1} parent=5 // pred_check_branch
        %190 = sbr.rel (%p187) target = $region12
      $region11: #{tpu_custom_call.1} parent=5 // pred_region
        %s191 = ssub.s32 %s18, 1
        // Predicated region
        $region13: #{tpu_custom_call.1} parent=11 // pred_check
          %p192 = pneg %p79
        $region14: #{tpu_custom_call.1} parent=11 // pred_check_branch
          %194 = sbr.rel (%p192) target = $region16
        $region15: #{tpu_custom_call.1} parent=11 // pred_region
          _
        $region16: #{tpu_custom_call.1} parent=11 // pred_fallthru
          _
        // Predicated region
        $region17: #{tpu_custom_call.1} parent=11 // pred_check
          %p195 = pneg %p100
        $region18: #{tpu_custom_call.1} parent=11 // pred_check_branch
          %197 = sbr.rel (%p195) target = $region20
        $region19: #{tpu_custom_call.1} parent=11 // pred_region
          _
        $region20: #{tpu_custom_call.1} parent=11 // pred_fallthru
          _
        // Predicated region
        $region21: #{tpu_custom_call.1} parent=11 // pred_check
          %p198 = pneg %p121
        $region22: #{tpu_custom_call.1} parent=11 // pred_check_branch
          %200 = sbr.rel (%p198) target = $region24
        $region23: #{tpu_custom_call.1} parent=11 // pred_region
          _
        $region24: #{tpu_custom_call.1} parent=11 // pred_fallthru
          _
      $region12: #{tpu_custom_call.1} parent=5 // pred_fallthru
        _
      %p201 = scmp.lt.s32.totalorder %s18, 2
      // Predicated region
      $region25: #{tpu_custom_call.1} parent=5 // pred_check
        %p202 = pneg %p201
      $region26: #{tpu_custom_call.1} parent=5 // pred_check_branch
        %204 = sbr.rel (%p202) target = $region28
      $region27: #{tpu_custom_call.1} parent=5 // pred_region
        // Predicated region
        $region29: #{tpu_custom_call.1} parent=27 // pred_check
          %p205 = pneg %p52
        $region30: #{tpu_custom_call.1} parent=27 // pred_check_branch
          %207 = sbr.rel (%p205) target = $region32
        $region31: #{tpu_custom_call.1} parent=27 // pred_region
          %s208 = smul.u32 2, %s26
          %p209 = scmp.lt.s32.totalorder %s25, 1
          %s210 = scalar_select %p209, %s25, 1
          %p211 = scmp.lt.s32.totalorder %s208, 1
          %s212 = scalar_select %p211, %s208, 1
          %s213 = smul.addr %s210, 8
          %s214 = sadd.s32 %s212, %s213
          %s215 = smul.addr %s214, 8
          %s216 = scalar_lea.vmem %s0, %s215
          %s217 = smul.u32 2, %s26
        $region32: #{tpu_custom_call.1} parent=27 // pred_fallthru
          _
      $region28: #{tpu_custom_call.1} parent=5 // pred_fallthru
        _
      %p218 = scmp.le.s32.totalorder 1, %s18
      %p219 = scmp.lt.s32.totalorder %s18, 3
      %p220 = pnand %p218, %p219
      %p221 = pneg %p220
      // Predicated region
      $region33: #{tpu_custom_call.1} parent=5 // pred_check
        _
      $region34: #{tpu_custom_call.1} parent=5 // pred_check_branch
        %223 = sbr.rel (%p220) target = $region36
      $region35: #{tpu_custom_call.1} parent=5 // pred_region
        %s224 = ssub.s32 %s18, 1
        %s225 = smul.u32 2, %s28
        %p226 = scmp.lt.s32.totalorder %s27, 1
        %s227 = scalar_select %p226, %s27, 1
        %p228 = scmp.lt.s32.totalorder %s225, 1
        %s229 = scalar_select %p228, %s225, 1
        %s230 = smul.addr %s227, 8
        %s231 = sadd.s32 %s229, %s230
        %s232 = smul.addr %s231, 8
        %s233 = scalar_lea.vmem %s0, %s232
        %p234 = pneg %p58
        %p235 = pneg %p55
        %p236 = pneg %p79
        %p237 = pneg %p76
        %p238 = pneg %p100
        %p239 = pneg %p97
        %p240 = pneg %p121
        %p241 = pneg %p118
        %p242 = pneg %p149
        %p243 = pneg %p146
        %s244 = sand.u32 %s136, 1
        %s245 = scalar_lea.sflag [#allocation3], %s244
        %s246 = sand.u32 %s136, 1
        %s247 = smul.addr %s246, 64
        %s248 = scalar_lea.vmem [#allocation2], %s247
        %p249 = pneg %p177
        %p250 = pneg %p174
        %s251 = sand.u32 %s164, 1
        %s252 = scalar_lea.sflag [#allocation5], %s251
        %s253 = sand.u32 %s164, 1
        %s254 = smul.addr %s253, 8
        %s255 = scalar_lea.vmem [#allocation4], %s254
        %s256 = smul.u32 2, %s28
        %p257 = scmp.lt.s32.totalorder %s27, 1
        %s258 = scalar_select %p257, %s27, 1
        %p259 = scmp.lt.s32.totalorder %s256, 1
        %s260 = scalar_select %p259, %s256, 1
        %s261 = smul.addr %s258, 8
        %s262 = sadd.s32 %s260, %s261
        %s263 = smul.addr %s262, 8
        %s264 = scalar_lea.vmem %s0, %s263
        %s265 = smul.u32 2, %s28
        %s266 = smul.u32 2, %s28
        %v268 = vld [vmem:[%s264] sm:$0xff]
        %v269 = vld [vmem:[%s264 + $0x8] sm:$0xff]
        %v270 = vld [vmem:[%s264 + $0x10] sm:$0xff]
        %v271 = vld [vmem:[%s264 + $0x18] sm:$0xff]
        %v272 = vld [vmem:[%s264 + $0x20] sm:$0xff]
        %v273 = vld [vmem:[%s264 + $0x28] sm:$0xff]
        %v274 = vld [vmem:[%s264 + $0x30] sm:$0xff]
        %v275 = vld [vmem:[%s264 + $0x38] sm:$0xff]
        %v276 = vld [vmem:[%s1] sm:$0xf]
        %v277 = vld [vmem:[%s1 + $0x4] sm:$0xf]
        %v278 = vld [vmem:[%s1 + $0x8] sm:$0xf]
        %v279 = vld [vmem:[%s1 + $0xc] sm:$0xf]
        %v280 = vld [vmem:[%s1 + $0x10] sm:$0xf]
        %v281 = vld [vmem:[%s1 + $0x14] sm:$0xf]
        %v282 = vld [vmem:[%s1 + $0x18] sm:$0xf]
        %v283 = vld [vmem:[%s1 + $0x1c] sm:$0xf]
        %v284 = vld [vmem:[%s1 + $0x20] sm:$0xf]
        %v285 = vld [vmem:[%s1 + $0x24] sm:$0xf]
        %v286 = vld [vmem:[%s1 + $0x28] sm:$0xf]
        %v287 = vld [vmem:[%s1 + $0x2c] sm:$0xf]
        %v288 = vld [vmem:[%s1 + $0x30] sm:$0xf]
        %v289 = vld [vmem:[%s1 + $0x34] sm:$0xf]
        %v290 = vld [vmem:[%s1 + $0x38] sm:$0xf]
        %v291 = vld [vmem:[%s1 + $0x3c] sm:$0xf]
        %v292 = vpack.c.bf16 %v270, %v268
        %v293 = vpack.c.bf16 %v271, %v269
        %v294 = vpack.c.bf16 %v274, %v272
        %v295 = vpack.c.bf16 %v275, %v273
        %v312 = vunpack.c.l.b16 %v276
        %v313 = vunpack.c.l.b16 %v277
        %v314 = vunpack.c.l.b16 %v278
        %v315 = vunpack.c.l.b16 %v279
        %v316 = vunpack.c.l.b16 %v280
        %v317 = vunpack.c.l.b16 %v281
        %v318 = vunpack.c.l.b16 %v282
        %v319 = vunpack.c.l.b16 %v283
        %v320 = vunpack.c.l.b16 %v284
        %v321 = vunpack.c.l.b16 %v285
        %v322 = vunpack.c.l.b16 %v286
        %v323 = vunpack.c.l.b16 %v287
        %v324 = vunpack.c.l.b16 %v288
        %v325 = vunpack.c.l.b16 %v289
        %v326 = vunpack.c.l.b16 %v290
        %v327 = vunpack.c.l.b16 %v291
        %v328 = vpack.c.b16 %v313, %v312
        %v329 = vpack.c.b16 %v315, %v314
        %v330 = vpack.c.b16 %v317, %v316
        %v331 = vpack.c.b16 %v319, %v318
        %v332 = vpack.c.b16 %v321, %v320
        %v333 = vpack.c.b16 %v323, %v322
        %v334 = vpack.c.b16 %v325, %v324
        %v335 = vpack.c.b16 %v327, %v326
        %vm336 = vcmask 261120
        %v338 = vsel %vm336, %v328, 0
        %v341 = vsel %vm336, %v329, 0
        %v344 = vsel %vm336, %v330, 0
        %v347 = vsel %vm336, %v331, 0
        %v350 = vsel %vm336, %v332, 0
        %v353 = vsel %vm336, %v333, 0
        %v356 = vsel %vm336, %v334, 0
        %v359 = vsel %vm336, %v335, 0
        %361 = vmatprep.subr.bf16.mxu0 %v293
        %362 = vmatpush1.bf16.msra.mxu0 %v292
        %363 = vmatprep.subr.bf16.mxu0 %v295
        %364 = vmatpush1.bf16.msra.mxu0 %v294
        %365 = vmatprep.subr.bf16.mxu0 0
        %366 = vmatpush1.bf16.msra.mxu0 0
        %367 = vmatprep.subr.bf16.mxu0 0
        %368 = vmatpush1.bf16.msra.mxu0 0
        %369 = vmatprep.subr.bf16.mxu0 0
        %370 = vmatpush1.bf16.msra.mxu0 0
        %371 = vmatprep.subr.bf16.mxu0 0
        %372 = vmatpush1.bf16.msra.mxu0 0
        %373 = vmatprep.subr.bf16.mxu0 0
        %374 = vmatpush1.bf16.msra.mxu0 0
        %375 = vmatprep.subr.bf16.mxu0 0
        %376 = vmatpush1.bf16.msra.mxu0 0
        %377 = vmatprep.subr.bf16.mxu0 0
        %378 = vmatpush1.bf16.msra.mxu0 0
        %379 = vmatprep.subr.bf16.mxu0 0
        %380 = vmatpush1.bf16.msra.mxu0 0
        %381 = vmatprep.subr.bf16.mxu0 0
        %382 = vmatpush1.bf16.msra.mxu0 0
        %383 = vmatprep.subr.bf16.mxu0 0
        %384 = vmatpush1.bf16.msra.mxu0 0
        %385 = vmatprep.subr.bf16.mxu0 0
        %386 = vmatpush1.bf16.msra.mxu0 0
        %387 = vmatprep.subr.bf16.mxu0 0
        %388 = vmatpush1.bf16.msra.mxu0 0
        %389 = vmatprep.subr.bf16.mxu0 0
        %390 = vmatpush1.bf16.msra.mxu0 0
        %391 = vmatprep.subr.bf16.mxu0 0
        %392 = vmatpush1.bf16.msra.mxu0 0
        %393 = vmatprep.mubr.bf16.mxu0 0
        %394 = vmatmul.mubr.bf16.gmra.mrb[0].mxu0 %v338
        %v395 = vpop.f32.mrb[0].mxu0
        %v396 = vadd.f32 0.0, %v395
        %v397 = vpop.f32.mrb[0].mxu0
        %v398 = vadd.f32 0.0, %v397
        %v399 = vpop.f32.mrb[0].mxu0
        %v400 = vadd.f32 0.0, %v399
        %v401 = vpop.f32.mrb[0].mxu0
        %v402 = vadd.f32 0.0, %v401
        %403 = vmatprep.mubr.bf16.mxu0 0
        %404 = vmatmul.mubr.bf16.gmra.mrb[0].mxu0 %v341
        %v405 = vpop.f32.mrb[0].mxu0
        %v406 = vadd.f32 0.0, %v405
        %v407 = vpop.f32.mrb[0].mxu0
        %v408 = vadd.f32 0.0, %v407
        %v409 = vpop.f32.mrb[0].mxu0
        %v410 = vadd.f32 0.0, %v409
        %v411 = vpop.f32.mrb[0].mxu0
        %v412 = vadd.f32 0.0, %v411
        %413 = vmatprep.mubr.bf16.mxu0 0
        %414 = vmatmul.mubr.bf16.gmra.mrb[0].mxu0 %v344
        %v415 = vpop.f32.mrb[0].mxu0
        %v416 = vadd.f32 0.0, %v415
        %v417 = vpop.f32.mrb[0].mxu0
        %v418 = vadd.f32 0.0, %v417
        %v419 = vpop.f32.mrb[0].mxu0
        %v420 = vadd.f32 0.0, %v419
        %v421 = vpop.f32.mrb[0].mxu0
        %v422 = vadd.f32 0.0, %v421
        %423 = vmatprep.mubr.bf16.mxu0 0
        %424 = vmatmul.mubr.bf16.gmra.mrb[0].mxu0 %v347
        %v425 = vpop.f32.mrb[0].mxu0
        %v426 = vadd.f32 0.0, %v425
        %v427 = vpop.f32.mrb[0].mxu0
        %v428 = vadd.f32 0.0, %v427
        %v429 = vpop.f32.mrb[0].mxu0
        %v430 = vadd.f32 0.0, %v429
        %v431 = vpop.f32.mrb[0].mxu0
        %v432 = vadd.f32 0.0, %v431
        %433 = vmatprep.mubr.bf16.mxu0 0
        %434 = vmatmul.mubr.bf16.gmra.mrb[0].mxu0 %v350
        %v435 = vpop.f32.mrb[0].mxu0
        %v436 = vadd.f32 0.0, %v435
        %v437 = vpop.f32.mrb[0].mxu0
        %v438 = vadd.f32 0.0, %v437
        %v439 = vpop.f32.mrb[0].mxu0
        %v440 = vadd.f32 0.0, %v439
        %v441 = vpop.f32.mrb[0].mxu0
        %v442 = vadd.f32 0.0, %v441
        %443 = vmatprep.mubr.bf16.mxu0 0
        %444 = vmatmul.mubr.bf16.gmra.mrb[0].mxu0 %v353
        %v445 = vpop.f32.mrb[0].mxu0
        %v446 = vadd.f32 0.0, %v445
        %v447 = vpop.f32.mrb[0].mxu0
        %v448 = vadd.f32 0.0, %v447
        %v449 = vpop.f32.mrb[0].mxu0
        %v450 = vadd.f32 0.0, %v449
        %v451 = vpop.f32.mrb[0].mxu0
        %v452 = vadd.f32 0.0, %v451
        %453 = vmatprep.mubr.bf16.mxu0 0
        %454 = vmatmul.mubr.bf16.gmra.mrb[0].mxu0 %v356
        %v455 = vpop.f32.mrb[0].mxu0
        %v456 = vadd.f32 0.0, %v455
        %v457 = vpop.f32.mrb[0].mxu0
        %v458 = vadd.f32 0.0, %v457
        %v459 = vpop.f32.mrb[0].mxu0
        %v460 = vadd.f32 0.0, %v459
        %v461 = vpop.f32.mrb[0].mxu0
        %v462 = vadd.f32 0.0, %v461
        %463 = vmatprep.mubr.bf16.mxu0 0
        %464 = vmatmul.mubr.bf16.gmra.mrb[0].mxu0 %v359
        %v465 = vpop.f32.mrb[0].mxu0
        %v466 = vadd.f32 0.0, %v465
        %v467 = vpop.f32.mrb[0].mxu0
        %v468 = vadd.f32 0.0, %v467
        %v469 = vpop.f32.mrb[0].mxu0
        %v470 = vadd.f32 0.0, %v469
        %v471 = vpop.f32.mrb[0].mxu0
        %v472 = vadd.f32 0.0, %v471
        %473 = vdwg.mxu0
        %v474 = vld [vmem:[%s3] sm:$0xff]
        %v475 = vld [vmem:[%s3 + $0x8] sm:$0xff]
        %v476 = vld [vmem:[%s3 + $0x10] sm:$0xff]
        %v477 = vld [vmem:[%s3 + $0x18] sm:$0xff]
        %v478 = vld [vmem:[%s3 + $0x20] sm:$0xff]
        %v479 = vld [vmem:[%s3 + $0x28] sm:$0xff]
        %v480 = vld [vmem:[%s3 + $0x30] sm:$0xff]
        %v481 = vld [vmem:[%s3 + $0x38] sm:$0xff]
        %v482 = vld [vmem:[%s3 + $0x40] sm:$0xff]
        %v483 = vld [vmem:[%s3 + $0x48] sm:$0xff]
        %v484 = vld [vmem:[%s3 + $0x50] sm:$0xff]
        %v485 = vld [vmem:[%s3 + $0x58] sm:$0xff]
        %v486 = vld [vmem:[%s3 + $0x60] sm:$0xff]
        %v487 = vld [vmem:[%s3 + $0x68] sm:$0xff]
        %v488 = vld [vmem:[%s3 + $0x70] sm:$0xff]
        %v489 = vld [vmem:[%s3 + $0x78] sm:$0xff]
        %491 = vset.pattern.permute.xlu0 0
        %492 = vperm.xlu0 %491, %v474
        %v493 = vpop.permute.xlu0 %492
        %496 = vset.pattern.permute.xlu0 0
        %497 = vperm.xlu0 %496, %v475
        %v498 = vpop.permute.xlu0 %497
        %501 = vset.pattern.permute.xlu0 0
        %502 = vperm.xlu0 %501, %v476
        %v503 = vpop.permute.xlu0 %502
        %506 = vset.pattern.permute.xlu0 0
        %507 = vperm.xlu0 %506, %v477
        %v508 = vpop.permute.xlu0 %507
        %511 = vset.pattern.permute.xlu0 0
        %512 = vperm.xlu0 %511, %v478
        %v513 = vpop.permute.xlu0 %512
        %516 = vset.pattern.permute.xlu0 0
        %517 = vperm.xlu0 %516, %v479
        %v518 = vpop.permute.xlu0 %517
        %521 = vset.pattern.permute.xlu0 0
        %522 = vperm.xlu0 %521, %v480
        %v523 = vpop.permute.xlu0 %522
        %526 = vset.pattern.permute.xlu0 0
        %527 = vperm.xlu0 %526, %v481
        %v528 = vpop.permute.xlu0 %527
        %531 = vset.pattern.permute.xlu0 0
        %532 = vperm.xlu0 %531, %v482
        %v533 = vpop.permute.xlu0 %532
        %536 = vset.pattern.permute.xlu0 0
        %537 = vperm.xlu0 %536, %v483
        %v538 = vpop.permute.xlu0 %537
        %541 = vset.pattern.permute.xlu0 0
        %542 = vperm.xlu0 %541, %v484
        %v543 = vpop.permute.xlu0 %542
        %546 = vset.pattern.permute.xlu0 0
        %547 = vperm.xlu0 %546, %v485
        %v548 = vpop.permute.xlu0 %547
        %551 = vset.pattern.permute.xlu0 0
        %552 = vperm.xlu0 %551, %v486
        %v553 = vpop.permute.xlu0 %552
        %556 = vset.pattern.permute.xlu0 0
        %557 = vperm.xlu0 %556, %v487
        %v558 = vpop.permute.xlu0 %557
        %561 = vset.pattern.permute.xlu0 0
        %562 = vperm.xlu0 %561, %v488
        %v563 = vpop.permute.xlu0 %562
        %566 = vset.pattern.permute.xlu0 0
        %567 = vperm.xlu0 %566, %v489
        %v568 = vpop.permute.xlu0 %567
        %v570 = vsub.f32 %v493, %v396
        %v571 = vsub.f32 %v493, %v398
        %v572 = vsub.f32 %v498, %v400
        %v573 = vsub.f32 %v498, %v402
        %v574 = vsub.f32 %v503, %v406
        %v575 = vsub.f32 %v503, %v408
        %v576 = vsub.f32 %v508, %v410
        %v577 = vsub.f32 %v508, %v412
        %v578 = vsub.f32 %v513, %v416
        %v579 = vsub.f32 %v513, %v418
        %v580 = vsub.f32 %v518, %v420
        %v581 = vsub.f32 %v518, %v422
        %v582 = vsub.f32 %v523, %v426
        %v583 = vsub.f32 %v523, %v428
        %v584 = vsub.f32 %v528, %v430
        %v585 = vsub.f32 %v528, %v432
        %v586 = vsub.f32 %v533, %v436
        %v587 = vsub.f32 %v533, %v438
        %v588 = vsub.f32 %v538, %v440
        %v589 = vsub.f32 %v538, %v442
        %v590 = vsub.f32 %v543, %v446
        %v591 = vsub.f32 %v543, %v448
        %v592 = vsub.f32 %v548, %v450
        %v593 = vsub.f32 %v548, %v452
        %v594 = vsub.f32 %v553, %v456
        %v595 = vsub.f32 %v553, %v458
        %v596 = vsub.f32 %v558, %v460
        %v597 = vsub.f32 %v558, %v462
        %v598 = vsub.f32 %v563, %v466
        %v599 = vsub.f32 %v563, %v468
        %v600 = vsub.f32 %v568, %v470
        %v601 = vsub.f32 %v568, %v472
        %v602 = vmin.f32 %v570, %v574
        %v603 = vmin.f32 %v572, %v576
        %v604 = vmin.f32 %v602, %v578
        %v605 = vmin.f32 %v603, %v580
        %v606 = vmin.f32 %v604, %v582
        %v607 = vmin.f32 %v605, %v584
        %v608 = vmin.f32 %v606, %v586
        %v609 = vmin.f32 %v607, %v588
        %v610 = vmin.f32 %v608, %v590
        %v611 = vmin.f32 %v609, %v592
        %v612 = vmin.f32 %v610, %v594
        %v613 = vmin.f32 %v611, %v596
        %v614 = vmin.f32 %v612, %v598
        %v615 = vmin.f32 %v613, %v600
        %v616 = vmin.f32 %v614, %v615
        %v617 = vrot.slane %v616, 4
        %v618 = vmin.f32 %v616, %v617
        %v619 = vrot.slane %v618, 2
        %v620 = vmin.f32 %v618, %v619
        %v621 = vrot.slane %v620, 1
        %v622 = vmin.f32 %v620, %v621
        %v623 = vmin.f32 %v571, %v575
        %v624 = vmin.f32 %v573, %v577
        %v625 = vmin.f32 %v623, %v579
        %v626 = vmin.f32 %v624, %v581
        %v627 = vmin.f32 %v625, %v583
        %v628 = vmin.f32 %v626, %v585
        %v629 = vmin.f32 %v627, %v587
        %v630 = vmin.f32 %v628, %v589
        %v631 = vmin.f32 %v629, %v591
        %v632 = vmin.f32 %v630, %v593
        %v633 = vmin.f32 %v631, %v595
        %v634 = vmin.f32 %v632, %v597
        %v635 = vmin.f32 %v633, %v599
        %v636 = vmin.f32 %v634, %v601
        %v637 = vmin.f32 %v635, %v636
        %v638 = vrot.slane %v637, 4
        %v639 = vmin.f32 %v637, %v638
        %v640 = vrot.slane %v639, 2
        %v641 = vmin.f32 %v639, %v640
        %v642 = vrot.slane %v641, 1
        %v643 = vmin.f32 %v641, %v642
        %v644 = vlaneseq
        %v645 = vshrl.u32 %v644, 7
        %v646 = vadd.s32 %v645, 8
        %v647 = vadd.s32 %v645, 16
        %v648 = vadd.s32 %v645, 24
        %v649 = vadd.s32 %v645, 32
        %v650 = vadd.s32 %v645, 40
        %v651 = vadd.s32 %v645, 48
        %v652 = vadd.s32 %v645, 56
        %v653 = vadd.s32 %v645, 64
        %v654 = vadd.s32 %v645, 72
        %v655 = vadd.s32 %v645, 80
        %v656 = vadd.s32 %v645, 88
        %v657 = vadd.s32 %v645, 96
        %v658 = vadd.s32 %v645, 104
        %v659 = vadd.s32 %v645, 112
        %v660 = vadd.s32 %v645, 120
        %vm661 = vcmp.eq.f32.partialorder %v570, %v622
        %vm662 = vcmp.eq.f32.partialorder %v571, %v643
        %vm663 = vcmp.eq.f32.partialorder %v572, %v622
        %vm664 = vcmp.eq.f32.partialorder %v573, %v643
        %vm665 = vcmp.eq.f32.partialorder %v574, %v622
        %vm666 = vcmp.eq.f32.partialorder %v575, %v643
        %vm667 = vcmp.eq.f32.partialorder %v576, %v622
        %vm668 = vcmp.eq.f32.partialorder %v577, %v643
        %vm669 = vcmp.eq.f32.partialorder %v578, %v622
        %vm670 = vcmp.eq.f32.partialorder %v579, %v643
        %vm671 = vcmp.eq.f32.partialorder %v580, %v622
        %vm672 = vcmp.eq.f32.partialorder %v581, %v643
        %vm673 = vcmp.eq.f32.partialorder %v582, %v622
        %vm674 = vcmp.eq.f32.partialorder %v583, %v643
        %vm675 = vcmp.eq.f32.partialorder %v584, %v622
        %vm676 = vcmp.eq.f32.partialorder %v585, %v643
        %vm677 = vcmp.eq.f32.partialorder %v586, %v622
        %vm678 = vcmp.eq.f32.partialorder %v587, %v643
        %vm679 = vcmp.eq.f32.partialorder %v588, %v622
        %vm680 = vcmp.eq.f32.partialorder %v589, %v643
        %vm681 = vcmp.eq.f32.partialorder %v590, %v622
        %vm682 = vcmp.eq.f32.partialorder %v591, %v643
        %vm683 = vcmp.eq.f32.partialorder %v592, %v622
        %vm684 = vcmp.eq.f32.partialorder %v593, %v643
        %vm685 = vcmp.eq.f32.partialorder %v594, %v622
        %vm686 = vcmp.eq.f32.partialorder %v595, %v643
        %vm687 = vcmp.eq.f32.partialorder %v596, %v622
        %vm688 = vcmp.eq.f32.partialorder %v597, %v643
        %vm689 = vcmp.eq.f32.partialorder %v598, %v622
        %vm690 = vcmp.eq.f32.partialorder %v599, %v643
        %vm691 = vcmp.eq.f32.partialorder %v600, %v622
        %vm692 = vcmp.eq.f32.partialorder %v601, %v643
        %v693 = vsel %vm661, %v645, 128
        %v694 = vsel %vm662, %v645, 128
        %v695 = vsel %vm663, %v646, 128
        %v696 = vsel %vm664, %v646, 128
        %v697 = vsel %vm665, %v647, 128
        %v698 = vsel %vm666, %v647, 128
        %v699 = vsel %vm667, %v648, 128
        %v700 = vsel %vm668, %v648, 128
        %v701 = vsel %vm669, %v649, 128
        %v702 = vsel %vm670, %v649, 128
        %v703 = vsel %vm671, %v650, 128
        %v704 = vsel %vm672, %v650, 128
        %v705 = vsel %vm673, %v651, 128
        %v706 = vsel %vm674, %v651, 128
        %v707 = vsel %vm675, %v652, 128
        %v708 = vsel %vm676, %v652, 128
        %v709 = vsel %vm677, %v653, 128
        %v710 = vsel %vm678, %v653, 128
        %v711 = vsel %vm679, %v654, 128
        %v712 = vsel %vm680, %v654, 128
        %v713 = vsel %vm681, %v655, 128
        %v714 = vsel %vm682, %v655, 128
        %v715 = vsel %vm683, %v656, 128
        %v716 = vsel %vm684, %v656, 128
        %v717 = vsel %vm685, %v657, 128
        %v718 = vsel %vm686, %v657, 128
        %v719 = vsel %vm687, %v658, 128
        %v720 = vsel %vm688, %v658, 128
        %v721 = vsel %vm689, %v659, 128
        %v722 = vsel %vm690, %v659, 128
        %v723 = vsel %vm691, %v660, 128
        %v724 = vsel %vm692, %v660, 128
        %vm725 = vcmp.lt.s32.totalorder %v693, %v697
        %v726 = vsel %vm725, %v693, %v697
        %vm727 = vcmp.lt.s32.totalorder %v695, %v699
        %v728 = vsel %vm727, %v695, %v699
        %vm729 = vcmp.lt.s32.totalorder %v726, %v701
        %v730 = vsel %vm729, %v726, %v701
        %vm731 = vcmp.lt.s32.totalorder %v728, %v703
        %v732 = vsel %vm731, %v728, %v703
        %vm733 = vcmp.lt.s32.totalorder %v730, %v705
        %v734 = vsel %vm733, %v730, %v705
        %vm735 = vcmp.lt.s32.totalorder %v732, %v707
        %v736 = vsel %vm735, %v732, %v707
        %vm737 = vcmp.lt.s32.totalorder %v734, %v709
        %v738 = vsel %vm737, %v734, %v709
        %vm739 = vcmp.lt.s32.totalorder %v736, %v711
        %v740 = vsel %vm739, %v736, %v711
        %vm741 = vcmp.lt.s32.totalorder %v738, %v713
        %v742 = vsel %vm741, %v738, %v713
        %vm743 = vcmp.lt.s32.totalorder %v740, %v715
        %v744 = vsel %vm743, %v740, %v715
        %vm745 = vcmp.lt.s32.totalorder %v742, %v717
        %v746 = vsel %vm745, %v742, %v717
        %vm747 = vcmp.lt.s32.totalorder %v744, %v719
        %v748 = vsel %vm747, %v744, %v719
        %vm749 = vcmp.lt.s32.totalorder %v746, %v721
        %v750 = vsel %vm749, %v746, %v721
        %vm751 = vcmp.lt.s32.totalorder %v748, %v723
        %v752 = vsel %vm751, %v748, %v723
        %vm753 = vcmp.lt.s32.totalorder %v750, %v752
        %v754 = vsel %vm753, %v750, %v752
        %v755 = vrot.slane %v754, 4
        %vm756 = vcmp.lt.s32.totalorder %v754, %v755
        %v757 = vsel %vm756, %v754, %v755
        %v758 = vrot.slane %v757, 2
        %vm759 = vcmp.lt.s32.totalorder %v757, %v758
        %v760 = vsel %vm759, %v757, %v758
        %v761 = vrot.slane %v760, 1
        %vm762 = vcmp.lt.s32.totalorder %v760, %v761
        %v763 = vsel %vm762, %v760, %v761
        %vm764 = vcmp.lt.s32.totalorder %v694, %v698
        %v765 = vsel %vm764, %v694, %v698
        %vm766 = vcmp.lt.s32.totalorder %v696, %v700
        %v767 = vsel %vm766, %v696, %v700
        %vm768 = vcmp.lt.s32.totalorder %v765, %v702
        %v769 = vsel %vm768, %v765, %v702
        %vm770 = vcmp.lt.s32.totalorder %v767, %v704
        %v771 = vsel %vm770, %v767, %v704
        %vm772 = vcmp.lt.s32.totalorder %v769, %v706
        %v773 = vsel %vm772, %v769, %v706
        %vm774 = vcmp.lt.s32.totalorder %v771, %v708
        %v775 = vsel %vm774, %v771, %v708
        %vm776 = vcmp.lt.s32.totalorder %v773, %v710
        %v777 = vsel %vm776, %v773, %v710
        %vm778 = vcmp.lt.s32.totalorder %v775, %v712
        %v779 = vsel %vm778, %v775, %v712
        %vm780 = vcmp.lt.s32.totalorder %v777, %v714
        %v781 = vsel %vm780, %v777, %v714
        %vm782 = vcmp.lt.s32.totalorder %v779, %v716
        %v783 = vsel %vm782, %v779, %v716
        %vm784 = vcmp.lt.s32.totalorder %v781, %v718
        %v785 = vsel %vm784, %v781, %v718
        %vm786 = vcmp.lt.s32.totalorder %v783, %v720
        %v787 = vsel %vm786, %v783, %v720
        %vm788 = vcmp.lt.s32.totalorder %v785, %v722
        %v789 = vsel %vm788, %v785, %v722
        %vm790 = vcmp.lt.s32.totalorder %v787, %v724
        %v791 = vsel %vm790, %v787, %v724
        %vm792 = vcmp.lt.s32.totalorder %v789, %v791
        %v793 = vsel %vm792, %v789, %v791
        %v794 = vrot.slane %v793, 4
        %vm795 = vcmp.lt.s32.totalorder %v793, %v794
        %v796 = vsel %vm795, %v793, %v794
        %v797 = vrot.slane %v796, 2
        %vm798 = vcmp.lt.s32.totalorder %v796, %v797
        %v799 = vsel %vm798, %v796, %v797
        %v800 = vrot.slane %v799, 1
        %vm801 = vcmp.lt.s32.totalorder %v799, %v800
        %v802 = vsel %vm801, %v799, %v800
        %vm803 = vcmp.eq.s32.totalorder %v645, %v763
        %vm804 = vcmp.eq.s32.totalorder %v645, %v802
        %vm805 = vcmp.eq.s32.totalorder %v646, %v763
        %vm806 = vcmp.eq.s32.totalorder %v646, %v802
        %vm807 = vcmp.eq.s32.totalorder %v647, %v763
        %vm808 = vcmp.eq.s32.totalorder %v647, %v802
        %vm809 = vcmp.eq.s32.totalorder %v648, %v763
        %vm810 = vcmp.eq.s32.totalorder %v648, %v802
        %vm811 = vcmp.eq.s32.totalorder %v649, %v763
        %vm812 = vcmp.eq.s32.totalorder %v649, %v802
        %vm813 = vcmp.eq.s32.totalorder %v650, %v763
        %vm814 = vcmp.eq.s32.totalorder %v650, %v802
        %vm815 = vcmp.eq.s32.totalorder %v651, %v763
        %vm816 = vcmp.eq.s32.totalorder %v651, %v802
        %vm817 = vcmp.eq.s32.totalorder %v652, %v763
        %vm818 = vcmp.eq.s32.totalorder %v652, %v802
        %vm819 = vcmp.eq.s32.totalorder %v653, %v763
        %vm820 = vcmp.eq.s32.totalorder %v653, %v802
        %vm821 = vcmp.eq.s32.totalorder %v654, %v763
        %vm822 = vcmp.eq.s32.totalorder %v654, %v802
        %vm823 = vcmp.eq.s32.totalorder %v655, %v763
        %vm824 = vcmp.eq.s32.totalorder %v655, %v802
        %vm825 = vcmp.eq.s32.totalorder %v656, %v763
        %vm826 = vcmp.eq.s32.totalorder %v656, %v802
        %vm827 = vcmp.eq.s32.totalorder %v657, %v763
        %vm828 = vcmp.eq.s32.totalorder %v657, %v802
        %vm829 = vcmp.eq.s32.totalorder %v658, %v763
        %vm830 = vcmp.eq.s32.totalorder %v658, %v802
        %vm831 = vcmp.eq.s32.totalorder %v659, %v763
        %vm832 = vcmp.eq.s32.totalorder %v659, %v802
        %vm833 = vcmp.eq.s32.totalorder %v660, %v763
        %vm834 = vcmp.eq.s32.totalorder %v660, %v802
        %v835 = vsel %vm803, 1, 0
        %v836 = vsel %vm804, 1, 0
        %v837 = vsel %vm805, 1, 0
        %v838 = vsel %vm806, 1, 0
        %v839 = vsel %vm807, 1, 0
        %v840 = vsel %vm808, 1, 0
        %v841 = vsel %vm809, 1, 0
        %v842 = vsel %vm810, 1, 0
        %v843 = vsel %vm811, 1, 0
        %v844 = vsel %vm812, 1, 0
        %v845 = vsel %vm813, 1, 0
        %v846 = vsel %vm814, 1, 0
        %v847 = vsel %vm815, 1, 0
        %v848 = vsel %vm816, 1, 0
        %v849 = vsel %vm817, 1, 0
        %v850 = vsel %vm818, 1, 0
        %v851 = vsel %vm819, 1, 0
        %v852 = vsel %vm820, 1, 0
        %v853 = vsel %vm821, 1, 0
        %v854 = vsel %vm822, 1, 0
        %v855 = vsel %vm823, 1, 0
        %v856 = vsel %vm824, 1, 0
        %v857 = vsel %vm825, 1, 0
        %v858 = vsel %vm826, 1, 0
        %v859 = vsel %vm827, 1, 0
        %v860 = vsel %vm828, 1, 0
        %v861 = vsel %vm829, 1, 0
        %v862 = vsel %vm830, 1, 0
        %v863 = vsel %vm831, 1, 0
        %v864 = vsel %vm832, 1, 0
        %v865 = vsel %vm833, 1, 0
        %v866 = vsel %vm834, 1, 0
        %v867 = vcvt.s32.f32 %v835
        %v868 = vcvt.s32.f32 %v836
        %v869 = vcvt.s32.f32 %v837
        %v870 = vcvt.s32.f32 %v838
        %v871 = vcvt.s32.f32 %v839
        %v872 = vcvt.s32.f32 %v840
        %v873 = vcvt.s32.f32 %v841
        %v874 = vcvt.s32.f32 %v842
        %v875 = vcvt.s32.f32 %v843
        %v876 = vcvt.s32.f32 %v844
        %v877 = vcvt.s32.f32 %v845
        %v878 = vcvt.s32.f32 %v846
        %v879 = vcvt.s32.f32 %v847
        %v880 = vcvt.s32.f32 %v848
        %v881 = vcvt.s32.f32 %v849
        %v882 = vcvt.s32.f32 %v850
        %v883 = vcvt.s32.f32 %v851
        %v884 = vcvt.s32.f32 %v852
        %v885 = vcvt.s32.f32 %v853
        %v886 = vcvt.s32.f32 %v854
        %v887 = vcvt.s32.f32 %v855
        %v888 = vcvt.s32.f32 %v856
        %v889 = vcvt.s32.f32 %v857
        %v890 = vcvt.s32.f32 %v858
        %v891 = vcvt.s32.f32 %v859
        %v892 = vcvt.s32.f32 %v860
        %v893 = vcvt.s32.f32 %v861
        %v894 = vcvt.s32.f32 %v862
        %v895 = vcvt.s32.f32 %v863
        %v896 = vcvt.s32.f32 %v864
        %v897 = vcvt.s32.f32 %v865
        %v898 = vcvt.s32.f32 %v866
        %v899 = vld [vmem:[%s2] sm:$0xff]
        %v900 = vld [vmem:[%s2 + $0x8] sm:$0xff]
        %v901 = vld [vmem:[%s2 + $0x10] sm:$0xff]
        %v902 = vld [vmem:[%s2 + $0x18] sm:$0xff]
        %903 = vmatprep.subr.mxu0 %v868
        %904 = vmatpush1.msra.mxu0 %v867
        %905 = vmatprep.subr.mxu0 %v870
        %906 = vmatpush1.msra.mxu0 %v869
        %907 = vmatprep.subr.mxu0 %v872
        %908 = vmatpush1.msra.mxu0 %v871
        %909 = vmatprep.subr.mxu0 %v874
        %910 = vmatpush1.msra.mxu0 %v873
        %911 = vmatprep.subr.mxu0 %v876
        %912 = vmatpush1.msra.mxu0 %v875
        %913 = vmatprep.subr.mxu0 %v878
        %914 = vmatpush1.msra.mxu0 %v877
        %915 = vmatprep.subr.mxu0 %v880
        %916 = vmatpush1.msra.mxu0 %v879
        %917 = vmatprep.subr.mxu0 %v882
        %918 = vmatpush1.msra.mxu0 %v881
        %919 = vmatprep.subr.mxu0 %v884
        %920 = vmatpush1.msra.mxu0 %v883
        %921 = vmatprep.subr.mxu0 %v886
        %922 = vmatpush1.msra.mxu0 %v885
        %923 = vmatprep.subr.mxu0 %v888
        %924 = vmatpush1.msra.mxu0 %v887
        %925 = vmatprep.subr.mxu0 %v890
        %926 = vmatpush1.msra.mxu0 %v889
        %927 = vmatprep.subr.mxu0 %v892
        %928 = vmatpush1.msra.mxu0 %v891
        %929 = vmatprep.subr.mxu0 %v894
        %930 = vmatpush1.msra.mxu0 %v893
        %931 = vmatprep.subr.mxu0 %v896
        %932 = vmatpush1.msra.mxu0 %v895
        %933 = vmatprep.subr.mxu0 %v898
        %934 = vmatpush1.msra.mxu0 %v897
        %935 = vmatprep.subr.mxu0 0.0
        %936 = vmatpush1.msra.mxu0 0.0
        %937 = vmatprep.subr.mxu0 0.0
        %938 = vmatpush1.msra.mxu0 0.0
        %939 = vmatprep.subr.mxu0 0.0
        %940 = vmatpush1.msra.mxu0 0.0
        %941 = vmatprep.subr.mxu0 0.0
        %942 = vmatpush1.msra.mxu0 0.0
        %943 = vmatprep.subr.mxu0 0.0
        %944 = vmatpush1.msra.mxu0 0.0
        %945 = vmatprep.subr.mxu0 0.0
        %946 = vmatpush1.msra.mxu0 0.0
        %947 = vmatprep.subr.mxu0 0.0
        %948 = vmatpush1.msra.mxu0 0.0
        %949 = vmatprep.subr.mxu0 0.0
        %950 = vmatpush1.msra.mxu0 0.0
        %951 = vmatprep.subr.mxu0 0.0
        %952 = vmatpush1.msra.mxu0 0.0
        %953 = vmatprep.subr.mxu0 0.0
        %954 = vmatpush1.msra.mxu0 0.0
        %955 = vmatprep.subr.mxu0 0.0
        %956 = vmatpush1.msra.mxu0 0.0
        %957 = vmatprep.subr.mxu0 0.0
        %958 = vmatpush1.msra.mxu0 0.0
        %959 = vmatprep.subr.mxu0 0.0
        %960 = vmatpush1.msra.mxu0 0.0
        %961 = vmatprep.subr.mxu0 0.0
        %962 = vmatpush1.msra.mxu0 0.0
        %963 = vmatprep.subr.mxu0 0.0
        %964 = vmatpush1.msra.mxu0 0.0
        %965 = vmatprep.subr.mxu0 0.0
        %966 = vmatpush1.msra.mxu0 0.0
        %967 = vmatprep.mubr.f32.mxu0 0.0
        %968 = vmatmul.mubr.f32.gmra.mrb[0].mxu0 %v899
        %v969 = vpop.f32.mrb[0].mxu0
        %v970 = vadd.f32 0.0, %v969
        %v971 = vpop.f32.mrb[0].mxu0
        %v972 = vadd.f32 0.0, %v971
        %973 = vmatprep.mubr.f32.mxu0 0.0
        %974 = vmatmul.mubr.f32.gmra.mrb[0].mxu0 %v900
        %v975 = vpop.f32.mrb[0].mxu0
        %v976 = vadd.f32 0.0, %v975
        %v977 = vpop.f32.mrb[0].mxu0
        %v978 = vadd.f32 0.0, %v977
        %979 = vmatprep.mubr.f32.mxu0 0.0
        %980 = vmatmul.mubr.f32.gmra.mrb[0].mxu0 %v901
        %v981 = vpop.f32.mrb[0].mxu0
        %v982 = vadd.f32 0.0, %v981
        %v983 = vpop.f32.mrb[0].mxu0
        %v984 = vadd.f32 0.0, %v983
        %985 = vmatprep.mubr.f32.mxu0 0.0
        %986 = vmatmul.mubr.f32.gmra.mrb[0].mxu0 %v902
        %v987 = vpop.f32.mrb[0].mxu0
        %v988 = vadd.f32 0.0, %v987
        %v989 = vpop.f32.mrb[0].mxu0
        %v990 = vadd.f32 0.0, %v989
        %991 = vdwg.mxu0
        %992 = vst [vmem:[%s248] sm:$0xff] %v970
        %993 = vst [vmem:[%s248 + $0x8] sm:$0xff] %v972
        %994 = vst [vmem:[%s248 + $0x10] sm:$0xff] %v976
        %995 = vst [vmem:[%s248 + $0x18] sm:$0xff] %v978
        %996 = vst [vmem:[%s248 + $0x20] sm:$0xff] %v982
        %997 = vst [vmem:[%s248 + $0x28] sm:$0xff] %v984
        %998 = vst [vmem:[%s248 + $0x30] sm:$0xff] %v988
        %999 = vst [vmem:[%s248 + $0x38] sm:$0xff] %v990
        %v1000 = vsub.f32 %v970, %v268
        %v1001 = vsub.f32 %v972, %v269
        %v1002 = vsub.f32 %v976, %v270
        %v1003 = vsub.f32 %v978, %v271
        %v1004 = vsub.f32 %v982, %v272
        %v1005 = vsub.f32 %v984, %v273
        %v1006 = vsub.f32 %v988, %v274
        %v1007 = vsub.f32 %v990, %v275
        %v1008 = vmul.f32 %v1000, %v1000
        %v1009 = vmul.f32 %v1001, %v1001
        %v1010 = vmul.f32 %v1002, %v1002
        %v1011 = vmul.f32 %v1003, %v1003
        %v1012 = vmul.f32 %v1004, %v1004
        %v1013 = vmul.f32 %v1005, %v1005
        %v1014 = vmul.f32 %v1006, %v1006
        %v1015 = vmul.f32 %v1007, %v1007
        %v1016 = vadd.f32 %v1008, %v1010
        %v1017 = vadd.f32 %v1016, %v1012
        %v1018 = vadd.f32 %v1017, %v1014
        %v1019 = vrot.slane %v1018, 4
        %v1020 = vadd.f32 %v1018, %v1019
        %v1021 = vrot.slane %v1020, 2
        %v1022 = vadd.f32 %v1020, %v1021
        %v1023 = vrot.slane %v1022, 1
        %v1024 = vadd.f32 %v1022, %v1023
        %v1025 = vadd.f32 %v1009, %v1011
        %v1026 = vadd.f32 %v1025, %v1013
        %v1027 = vadd.f32 %v1026, %v1015
        %v1028 = vrot.slane %v1027, 4
        %v1029 = vadd.f32 %v1027, %v1028
        %v1030 = vrot.slane %v1029, 2
        %v1031 = vadd.f32 %v1029, %v1030
        %v1032 = vrot.slane %v1031, 1
        %v1033 = vadd.f32 %v1031, %v1032
        %vm1034 = vcmask 1040384
        %v1035 = vsel %vm1034, %v1024, 0.0
        %v1036 = vsel %vm1034, %v1033, 0.0
        %v1037 = vadd.f32 %v1035, %v1036
        %1038 = vadd.xlane.f32.xlu0 %v1037
        %v1039 = vpop.xlane.xlu0 %1038
        %v1040 = vrot.slane %v1039, 4
        %v1041 = vadd.f32 %v1039, %v1040
        %v1042 = vrot.slane %v1041, 2
        %v1043 = vadd.f32 %v1041, %v1042
        %v1044 = vrot.slane %v1043, 1
        %v1045 = vadd.f32 %v1043, %v1044
        %s1046 = vtos %v1045
        %v1047 = vstv %s1046
        %1048 = vst [vmem:[%s255] sm:$0xff] %v1047
        %s1049 = sand.u32 %s136, 1
        %s1050 = scalar_lea.sflag [#allocation3], %s1049
        %s1051 = sand.u32 %s136, 1
        %s1052 = smul.addr %s1051, 64
        %s1053 = scalar_lea.vmem [#allocation2], %s1052
        %s1054 = sand.u32 %s164, 1
        %s1055 = scalar_lea.sflag [#allocation5], %s1054
        %s1056 = sand.u32 %s164, 1
        %s1057 = smul.addr %s1056, 8
        %s1058 = scalar_lea.vmem [#allocation4], %s1057
        // Predicated region
        $region37: #{tpu_custom_call.1} parent=35 // pred_check
          %p1059 = pneg %p146
        $region38: #{tpu_custom_call.1} parent=35 // pred_check_branch
          %1061 = sbr.rel (%p1059) target = $region40
        $region39: #{tpu_custom_call.1} parent=35 // pred_region
          %s1062 = smul.u32 2, %s28
          %s1064 = ssub.s32 1024, 1024
          %1065 = vsyncadd %s1050, %s1064
          %s1066 = smul.addr %s27, 8
          %s1067 = sadd.s32 %s1062, %s1066
          %s1068 = smul.addr %s1067, 128
          %s1069 = scalar_lea.hbm %s4, %s1068
          %s1070 = sshll.u32 %s1053, 4
          %s1071 = int_to_ptr.vmem [resolvable:$true] %s1070
          %1076 = dma.vmem_to_hbm [thread:$0]  %s1071, 1024, %s1069, %s1050, 256, 256, 16
        $region40: #{tpu_custom_call.1} parent=35 // pred_fallthru
          _
        // Predicated region
        $region41: #{tpu_custom_call.1} parent=35 // pred_check
          %p1077 = pneg %p174
        $region42: #{tpu_custom_call.1} parent=35 // pred_check_branch
          %1079 = sbr.rel (%p1077) target = $region44
        $region43: #{tpu_custom_call.1} parent=35 // pred_region
          %s1081 = ssub.s32 128, 128
          %1082 = vsyncadd %s1055, %s1081
          %s1083 = sadd.s32 %s28, %s27
          %s1084 = smul.addr %s1083, 128
          %s1085 = scalar_lea.hbm %s5, %s1084
          %s1087 = sshll.u32 %s1058, 4
          %s1088 = int_to_ptr.vmem [resolvable:$true] %s1087
          %1090 = dma.vmem_to_hbm [thread:$0]  %s1088, 128, %s1085, %s1055
        $region44: #{tpu_custom_call.1} parent=35 // pred_fallthru
          _
      $region36: #{tpu_custom_call.1} parent=5 // pred_fallthru
        _
      %p1091 = scmp.le.s32.totalorder 2, %s18
      // Predicated region
      $region45: #{tpu_custom_call.1} parent=5 // pred_check
        %p1092 = pneg %p1091
      $region46: #{tpu_custom_call.1} parent=5 // pred_check_branch
        %1094 = sbr.rel (%p1092) target = $region48
      $region47: #{tpu_custom_call.1} parent=5 // pred_region
        %s1095 = ssub.s32 %s18, 2
        // Predicated region
        $region49: #{tpu_custom_call.1} parent=47 // pred_check
          %p1096 = pneg %p152
        $region50: #{tpu_custom_call.1} parent=47 // pred_check_branch
          %1098 = sbr.rel (%p1096) target = $region52
        $region51: #{tpu_custom_call.1} parent=47 // pred_region
          %s1099 = sand.u32 %s137, 1
          %s1100 = scalar_lea.sflag [#allocation3], %s1099
          %s1101 = sand.u32 %s137, 1
          %s1102 = smul.addr %s1101, 64
          %s1103 = scalar_lea.vmem [#allocation2], %s1102
          %1104 = dma.done %s1100, 1024
        $region52: #{tpu_custom_call.1} parent=47 // pred_fallthru
          _
        // Predicated region
        $region53: #{tpu_custom_call.1} parent=47 // pred_check
          %p1105 = pneg %p180
        $region54: #{tpu_custom_call.1} parent=47 // pred_check_branch
          %1107 = sbr.rel (%p1105) target = $region56
        $region55: #{tpu_custom_call.1} parent=47 // pred_region
          %s1108 = sand.u32 %s165, 1
          %s1109 = scalar_lea.sflag [#allocation5], %s1108
          %s1110 = sand.u32 %s165, 1
          %s1111 = smul.addr %s1110, 8
          %s1112 = scalar_lea.vmem [#allocation4], %s1111
          %1113 = dma.done %s1109, 128
        $region56: #{tpu_custom_call.1} parent=47 // pred_fallthru
          _
      $region48: #{tpu_custom_call.1} parent=5 // pred_fallthru
        _
    $region6: #{tpu_custom_call.1} parent=1 // loop_footer
      %s22 = sadd.s32 1, %s18
    $region7: #{tpu_custom_call.1} parent=1 // loop_footer_branch
      %17 = sbr.rel target = $region3
    $region8: #{tpu_custom_call.1} parent=1 // loop_exit
      _
    %1114 = vsyncpa [#allocation3], 1
    %s1115 = scalar_lea.sflag [#allocation3], 1
    %1116 = vsyncpa %s1115, 1
    %1117 = vsyncpa [#allocation5], 1
    %s1118 = scalar_lea.sflag [#allocation5], 1
    %1119 = vsyncpa %s1118, 1

</llo_original>
